<compile_context>
chip_gen: v7x
topology: tpu7x:2x2x1
jax: 0.10.0
libtpu: 0.0.40
codegen_flags: <defaults>
</compile_context>

<pallas_src>
import functools

import jax
import jax.numpy as jnp
import numpy as np
from jax import lax
from jax.experimental import pallas as pl
from jax.experimental.pallas import tpu as pltpu

EPS = 1e-5
# TODO(synk): Dropout2d in training mode (stochastic channel dropout) and
# BatchNorm batch-statistics mode are not implemented; eval-mode semantics
# (identity dropout, running stats) are used, matching model.eval().


def _resnet_block_kernel(x_ref, mask_ref, dw1_ref, b1_ref, pw1_ref,
                         dw2_ref, b2_ref, pw2_ref, o_ref, *, img_w, use_mxu):
    C, L = x_ref.shape  # L = Nb * H * W (lane-dense, multiple of 128)

    # Load the 9 per-tap boundary masks once; reused by both half-blocks.
    mask_rows = [mask_ref[k:k + 1, :] for k in range(9)]

    def half_block(cur, dw_ref, b_ref, pw_ref):
        taps = dw_ref[...]                       # (9, C, 1) BN-folded dw taps
        # Depthwise 3x3: center tap initialises the accumulator (no roll/mask).
        acc = taps[4] * cur
        for k in range(9):
            if k == 4:
                continue
            dh, dw = k // 3 - 1, k % 3 - 1
            # shifted[p] = cur[p + dh*W + dw]  (circular; wraps are masked out)
            shift = (-(dh * img_w + dw)) % L
            shifted = pltpu.roll(cur, shift, 1)
            # Boundary mask zeroes contributions that crossed an image edge
            # (or wrapped across batch images in the flattened layout).
            acc = acc + taps[k] * (shifted * mask_rows[k])
        # Folded BatchNorm bias + ReLU.
        y = jnp.maximum(acc + b_ref[...], 0.0)
        # 1x1 pointwise conv (no bias).
        if use_mxu:
            y2 = jnp.dot(pw_ref[...], y.astype(jnp.bfloat16),
                         preferred_element_type=jnp.float32)
        else:
            pw = pw_ref[...]                     # (C_in, C_out, 1) f32
            y2 = pw[0] * y[0:1, :]
            for c in range(1, C):
                y2 = y2 + pw[c] * y[c:c + 1, :]
        # Dropout2d: identity in eval mode.
        return y2

    h1 = half_block(x_ref[...], dw1_ref, b1_ref, pw1_ref)
    h2 = half_block(h1, dw2_ref, b2_ref, pw2_ref)
    o_ref[...] = h2.astype(o_ref.dtype)


def _build_tap_masks(H, W, nb):
    """(9, nb*H*W) f32 validity mask per 3x3 tap (1 inside, 0 past an edge)."""
    hw = H * W
    pos = np.arange(nb * hw)
    col = pos % W
    row = (pos % hw) // W
    masks = np.empty((9, nb * hw), np.float32)
    for k in range(9):
        dh, dw = k // 3 - 1, k % 3 - 1
        ok = np.ones(nb * hw, bool)
        if dh == -1:
            ok &= row > 0
        elif dh == 1:
            ok &= row < H - 1
        if dw == -1:
            ok &= col > 0
        elif dw == 1:
            ok &= col < W - 1
        masks[k] = ok
    return jnp.asarray(masks)


def _fold_bn(dw, bn):
    """Fold eval-mode BN into the depthwise taps + a bias.

    Returns taps (9, C, 1) and bias (C, 1), both laid out so the kernel's
    broadcasts are cheap sublane-scalar -> lane splats (no lane relayouts).
    """
    C = dw.shape[0]
    gamma, beta, mean, var = bn[0], bn[1], bn[2], bn[3]
    scale = gamma * lax.rsqrt(var + EPS)                              # (C,)
    taps = (dw * scale[:, None, None]).reshape(C, 9).T[:, :, None]    # (9,C,1)
    bias = (beta - mean * scale)[:, None]                             # (C,1)
    return taps, bias


def resnet_block(x, params, *, batch_block=None):
    """x: (N, C, H, W) float32. params: dict of weights (see init_params)."""
    N, C, H, W = x.shape
    hw = H * W

    if batch_block is None:
        # Target a few thousand lanes per grid step, but keep >= 2 grid steps
        # when possible so both v7x TensorCores get work.  Require the block's
        # lane extent to be a multiple of 128 (unmasked stores); otherwise
        # fall back to a single full-array block, which is always layout-legal.
        target = max(1, 2048 // hw)
        if N >= 2:
            target = max(1, min(target, N // 2))
        batch_block = N
        for d in range(min(target, N), 0, -1):
            if N % d == 0 and (d * hw) % 128 == 0:
                batch_block = d
                break
    assert N % batch_block == 0, "batch_block must divide N"
    num_groups = N // batch_block
    L = batch_block * hw

    # Lane-dense layout: channels on sublanes, flattened (batch, spatial) lanes.
    x_flat = jnp.transpose(x, (1, 0, 2, 3)).reshape(C, N * hw)

    taps1, b1 = _fold_bn(params["dw1"], params["bn1"])
    taps2, b2 = _fold_bn(params["dw2"], params["bn2"])

    use_mxu = C >= 16
    if use_mxu:
        # bf16 MXU operands, f32 accumulation.
        pw1 = params["pw1"].astype(jnp.bfloat16)           # (C_out, C_in)
        pw2 = params["pw2"].astype(jnp.bfloat16)
    else:
        # Tiny C: 1x1 conv as C broadcast-FMAs on the VPU (f32, exact).
        pw1 = jnp.transpose(params["pw1"])[:, :, None]     # (C_in, C_out, 1)
        pw2 = jnp.transpose(params["pw2"])[:, :, None]

    masks = _build_tap_masks(H, W, batch_block)            # (9, L)

    kernel = functools.partial(_resnet_block_kernel, img_w=W, use_mxu=use_mxu)
    const = lambda ndim: (lambda g: (0,) * ndim)

    out_flat = pl.pallas_call(
        kernel,
        out_shape=jax.ShapeDtypeStruct((C, N * hw), x.dtype),
        grid_spec=pltpu.PrefetchScalarGridSpec(
            num_scalar_prefetch=0,
            grid=(num_groups,),
            in_specs=[
                pl.BlockSpec((C, L), lambda g: (0, g)),    # x slab
                pl.BlockSpec((9, L), const(2)),            # tap boundary masks
                pl.BlockSpec((9, C, 1), const(3)),         # taps1 (BN folded)
                pl.BlockSpec((C, 1), const(2)),            # bias1
                pl.BlockSpec(pw1.shape, const(pw1.ndim)),  # pw1
                pl.BlockSpec((9, C, 1), const(3)),         # taps2
                pl.BlockSpec((C, 1), const(2)),            # bias2
                pl.BlockSpec(pw2.shape, const(pw2.ndim)),  # pw2
            ],
            out_specs=pl.BlockSpec((C, L), lambda g: (0, g)),
        ),
        # Reuse the (temporary) input slab's HBM buffer for the output; blocks
        # are read-once / written-once and disjoint across grid steps.
        input_output_aliases={0: 0},
        compiler_params=pltpu.CompilerParams(
            dimension_semantics=("parallel",),
            vmem_limit_bytes=32 * 1024 * 1024),
    )(x_flat, masks, taps1, b1, pw1, taps2, b2, pw2)

    return out_flat.reshape(C, N, H, W).transpose(1, 0, 2, 3)


def init_params(key, C):
    ks = jax.random.split(key, 12)

    def bn_params(kg, kb, km, kv):
        gamma = 1.0 + 0.1 * jax.random.normal(kg, (C,), jnp.float32)
        beta = 0.1 * jax.random.normal(kb, (C,), jnp.float32)
        mean = 0.1 * jax.random.normal(km, (C,), jnp.float32)
        var = 0.5 + jnp.abs(jax.random.normal(kv, (C,), jnp.float32)) * 0.2
        return jnp.stack([gamma, beta, mean, var], axis=0)  # (4, C)

    return {
        # depthwise conv weight: PyTorch shape (C,1,3,3) -> squeezed to (C,3,3)
        "dw1": 0.2 * jax.random.normal(ks[0], (C, 3, 3), jnp.float32),
        "bn1": bn_params(ks[1], ks[2], ks[3], ks[4]),
        # 1x1 conv weight: PyTorch shape (C,C,1,1) -> squeezed to (C_out, C_in)
        "pw1": 0.2 * jax.random.normal(ks[5], (C, C), jnp.float32),
        "dw2": 0.2 * jax.random.normal(ks[6], (C, 3, 3), jnp.float32),
        "bn2": bn_params(ks[7], ks[8], ks[9], ks[10]),
        "pw2": 0.2 * jax.random.normal(ks[11], (C, C), jnp.float32),
    }


def _reference(x, params):
    """Pure-JAX reference using lax.conv_general_dilated (NCHW)."""
    def half(cur, dw, bn, pw):
        C = cur.shape[1]
        w_dw = dw.reshape(C, 1, 3, 3)
        y = lax.conv_general_dilated(
            cur, w_dw, window_strides=(1, 1), padding=((1, 1), (1, 1)),
            dimension_numbers=("NCHW", "OIHW", "NCHW"), feature_group_count=C)
        gamma, beta, mean, var = bn[0], bn[1], bn[2], bn[3]
        y = (gamma[None, :, None, None] * (y - mean[None, :, None, None])
             * lax.rsqrt(var[None, :, None, None] + EPS)
             + beta[None, :, None, None])
        y = jnp.maximum(y, 0.0)
        w_pw = pw.reshape(C, C, 1, 1)
        y = lax.conv_general_dilated(
            y, w_pw, window_strides=(1, 1), padding=((0, 0), (0, 0)),
            dimension_numbers=("NCHW", "OIHW", "NCHW"))
        return y

    h1 = half(x, params["dw1"], params["bn1"], params["pw1"])
    return half(h1, params["dw2"], params["bn2"], params["pw2"])


if __name__ == "__main__":
    key = jax.random.PRNGKey(0)
    kx, kp = jax.random.split(key)
    N, C, H, W = 2, 4, 16, 16
    x = jax.random.normal(kx, (N, C, H, W), jnp.float32)
    params = init_params(kp, C)

    out = jax.block_until_ready(resnet_block(x, params))
    ref = jax.block_until_ready(_reference(x, params))

    assert out.shape == (N, C, H, W)
    tol = 2e-2 if C >= 16 else 2e-3   # bf16 MXU path needs a looser tolerance
    err = jnp.max(jnp.abs(out - ref))
    assert jnp.allclose(out, ref, rtol=tol, atol=tol), f"max abs err {err}"
    print("KERNEL_OK")
</pallas_src>

<mosaic_0001>
module attributes {stable_mosaic.version = 11 : i64} {
  func.func @_resnet_block_kernel(%arg0: i32, %arg1: memref<4x256xf32, #tpu.memory_space<vmem>>, %arg2: memref<9x256xf32, #tpu.memory_space<vmem>>, %arg3: memref<9x4x1xf32, #tpu.memory_space<vmem>>, %arg4: memref<4x1xf32, #tpu.memory_space<vmem>>, %arg5: memref<4x4x1xf32, #tpu.memory_space<vmem>>, %arg6: memref<9x4x1xf32, #tpu.memory_space<vmem>>, %arg7: memref<4x1xf32, #tpu.memory_space<vmem>>, %arg8: memref<4x4x1xf32, #tpu.memory_space<vmem>>, %arg9: memref<4x256xf32, #tpu.memory_space<vmem>>) attributes {dimension_semantics = [#tpu.dimension_semantics<parallel>], iteration_bounds = array<i64: 2>, scalar_prefetch = 0 : i64, scratch_operands = 0 : i64, tpu.core_type = #tpu.core_type<tc>, window_params = [{transform_indices = @transform_0, window_bounds = array<i64: 4, 256>}, {pipeline_mode = #tpu.pipeline_mode<synchronous>, transform_indices = @transform_1, window_bounds = array<i64: 9, 256>}, {pipeline_mode = #tpu.pipeline_mode<synchronous>, transform_indices = @transform_2, window_bounds = array<i64: 9, 4, 1>}, {pipeline_mode = #tpu.pipeline_mode<synchronous>, transform_indices = @transform_3, window_bounds = array<i64: 4, 1>}, {pipeline_mode = #tpu.pipeline_mode<synchronous>, transform_indices = @transform_4, window_bounds = array<i64: 4, 4, 1>}, {pipeline_mode = #tpu.pipeline_mode<synchronous>, transform_indices = @transform_5, window_bounds = array<i64: 9, 4, 1>}, {pipeline_mode = #tpu.pipeline_mode<synchronous>, transform_indices = @transform_6, window_bounds = array<i64: 4, 1>}, {pipeline_mode = #tpu.pipeline_mode<synchronous>, transform_indices = @transform_7, window_bounds = array<i64: 4, 4, 1>}, {transform_indices = @transform_8, window_bounds = array<i64: 4, 256>}]} {
    %c0 = arith.constant 0 : index
    %c0_0 = arith.constant 0 : index
    %0 = vector.load %arg2[%c0, %c0_0] : memref<9x256xf32, #tpu.memory_space<vmem>>, vector<1x256xf32>
    %c1 = arith.constant 1 : index
    %c0_1 = arith.constant 0 : index
    %1 = vector.load %arg2[%c1, %c0_1] : memref<9x256xf32, #tpu.memory_space<vmem>>, vector<1x256xf32>
    %c2 = arith.constant 2 : index
    %c0_2 = arith.constant 0 : index
    %2 = vector.load %arg2[%c2, %c0_2] : memref<9x256xf32, #tpu.memory_space<vmem>>, vector<1x256xf32>
    %c3 = arith.constant 3 : index
    %c0_3 = arith.constant 0 : index
    %3 = vector.load %arg2[%c3, %c0_3] : memref<9x256xf32, #tpu.memory_space<vmem>>, vector<1x256xf32>
    %c5 = arith.constant 5 : index
    %c0_4 = arith.constant 0 : index
    %4 = vector.load %arg2[%c5, %c0_4] : memref<9x256xf32, #tpu.memory_space<vmem>>, vector<1x256xf32>
    %c6 = arith.constant 6 : index
    %c0_5 = arith.constant 0 : index
    %5 = vector.load %arg2[%c6, %c0_5] : memref<9x256xf32, #tpu.memory_space<vmem>>, vector<1x256xf32>
    %c7 = arith.constant 7 : index
    %c0_6 = arith.constant 0 : index
    %6 = vector.load %arg2[%c7, %c0_6] : memref<9x256xf32, #tpu.memory_space<vmem>>, vector<1x256xf32>
    %c8 = arith.constant 8 : index
    %c0_7 = arith.constant 0 : index
    %7 = vector.load %arg2[%c8, %c0_7] : memref<9x256xf32, #tpu.memory_space<vmem>>, vector<1x256xf32>
    %c0_8 = arith.constant 0 : index
    %c0_9 = arith.constant 0 : index
    %8 = vector.load %arg1[%c0_8, %c0_9] : memref<4x256xf32, #tpu.memory_space<vmem>>, vector<4x256xf32>
    %c0_10 = arith.constant 0 : index
    %c0_11 = arith.constant 0 : index
    %c0_12 = arith.constant 0 : index
    %9 = vector.load %arg3[%c0_10, %c0_11, %c0_12] : memref<9x4x1xf32, #tpu.memory_space<vmem>>, vector<9x4x1xf32>
    %10 = vector.extract_strided_slice %9 {offsets = [4, 0, 0], sizes = [1, 4, 1], strides = [1, 1, 1]} : vector<9x4x1xf32> to vector<1x4x1xf32>
    %11 = vector.shape_cast %10 : vector<1x4x1xf32> to vector<4x1xf32>
    %12 = vector.broadcast %11 : vector<4x1xf32> to vector<4x256xf32>
    %13 = arith.mulf %12, %8 : vector<4x256xf32>
    %c17_i32 = arith.constant 17 : i32
    %14 = tpu.dynamic_rotate %8 by %c17_i32 dim 1 : vector<4x256xf32>, i32 -> vector<4x256xf32>
    %15 = vector.extract_strided_slice %9 {offsets = [0, 0, 0], sizes = [1, 4, 1], strides = [1, 1, 1]} : vector<9x4x1xf32> to vector<1x4x1xf32>
    %16 = vector.shape_cast %15 : vector<1x4x1xf32> to vector<4x1xf32>
    %17 = vector.broadcast %0 : vector<1x256xf32> to vector<4x256xf32>
    %18 = arith.mulf %14, %17 : vector<4x256xf32>
    %19 = vector.broadcast %16 : vector<4x1xf32> to vector<4x256xf32>
    %20 = arith.mulf %19, %18 : vector<4x256xf32>
    %21 = arith.addf %13, %20 : vector<4x256xf32>
    %c16_i32 = arith.constant 16 : i32
    %22 = tpu.dynamic_rotate %8 by %c16_i32 dim 1 : vector<4x256xf32>, i32 -> vector<4x256xf32>
    %23 = vector.extract_strided_slice %9 {offsets = [1, 0, 0], sizes = [1, 4, 1], strides = [1, 1, 1]} : vector<9x4x1xf32> to vector<1x4x1xf32>
    %24 = vector.shape_cast %23 : vector<1x4x1xf32> to vector<4x1xf32>
    %25 = vector.broadcast %1 : vector<1x256xf32> to vector<4x256xf32>
    %26 = arith.mulf %22, %25 : vector<4x256xf32>
    %27 = vector.broadcast %24 : vector<4x1xf32> to vector<4x256xf32>
    %28 = arith.mulf %27, %26 : vector<4x256xf32>
    %29 = arith.addf %21, %28 : vector<4x256xf32>
    %c15_i32 = arith.constant 15 : i32
    %30 = tpu.dynamic_rotate %8 by %c15_i32 dim 1 : vector<4x256xf32>, i32 -> vector<4x256xf32>
    %31 = vector.extract_strided_slice %9 {offsets = [2, 0, 0], sizes = [1, 4, 1], strides = [1, 1, 1]} : vector<9x4x1xf32> to vector<1x4x1xf32>
    %32 = vector.shape_cast %31 : vector<1x4x1xf32> to vector<4x1xf32>
    %33 = vector.broadcast %2 : vector<1x256xf32> to vector<4x256xf32>
    %34 = arith.mulf %30, %33 : vector<4x256xf32>
    %35 = vector.broadcast %32 : vector<4x1xf32> to vector<4x256xf32>
    %36 = arith.mulf %35, %34 : vector<4x256xf32>
    %37 = arith.addf %29, %36 : vector<4x256xf32>
    %c1_i32 = arith.constant 1 : i32
    %38 = tpu.dynamic_rotate %8 by %c1_i32 dim 1 : vector<4x256xf32>, i32 -> vector<4x256xf32>
    %39 = vector.extract_strided_slice %9 {offsets = [3, 0, 0], sizes = [1, 4, 1], strides = [1, 1, 1]} : vector<9x4x1xf32> to vector<1x4x1xf32>
    %40 = vector.shape_cast %39 : vector<1x4x1xf32> to vector<4x1xf32>
    %41 = vector.broadcast %3 : vector<1x256xf32> to vector<4x256xf32>
    %42 = arith.mulf %38, %41 : vector<4x256xf32>
    %43 = vector.broadcast %40 : vector<4x1xf32> to vector<4x256xf32>
    %44 = arith.mulf %43, %42 : vector<4x256xf32>
    %45 = arith.addf %37, %44 : vector<4x256xf32>
    %c255_i32 = arith.constant 255 : i32
    %46 = tpu.dynamic_rotate %8 by %c255_i32 dim 1 : vector<4x256xf32>, i32 -> vector<4x256xf32>
    %47 = vector.extract_strided_slice %9 {offsets = [5, 0, 0], sizes = [1, 4, 1], strides = [1, 1, 1]} : vector<9x4x1xf32> to vector<1x4x1xf32>
    %48 = vector.shape_cast %47 : vector<1x4x1xf32> to vector<4x1xf32>
    %49 = vector.broadcast %4 : vector<1x256xf32> to vector<4x256xf32>
    %50 = arith.mulf %46, %49 : vector<4x256xf32>
    %51 = vector.broadcast %48 : vector<4x1xf32> to vector<4x256xf32>
    %52 = arith.mulf %51, %50 : vector<4x256xf32>
    %53 = arith.addf %45, %52 : vector<4x256xf32>
    %c241_i32 = arith.constant 241 : i32
    %54 = tpu.dynamic_rotate %8 by %c241_i32 dim 1 : vector<4x256xf32>, i32 -> vector<4x256xf32>
    %55 = vector.extract_strided_slice %9 {offsets = [6, 0, 0], sizes = [1, 4, 1], strides = [1, 1, 1]} : vector<9x4x1xf32> to vector<1x4x1xf32>
    %56 = vector.shape_cast %55 : vector<1x4x1xf32> to vector<4x1xf32>
    %57 = vector.broadcast %5 : vector<1x256xf32> to vector<4x256xf32>
    %58 = arith.mulf %54, %57 : vector<4x256xf32>
    %59 = vector.broadcast %56 : vector<4x1xf32> to vector<4x256xf32>
    %60 = arith.mulf %59, %58 : vector<4x256xf32>
    %61 = arith.addf %53, %60 : vector<4x256xf32>
    %c240_i32 = arith.constant 240 : i32
    %62 = tpu.dynamic_rotate %8 by %c240_i32 dim 1 : vector<4x256xf32>, i32 -> vector<4x256xf32>
    %63 = vector.extract_strided_slice %9 {offsets = [7, 0, 0], sizes = [1, 4, 1], strides = [1, 1, 1]} : vector<9x4x1xf32> to vector<1x4x1xf32>
    %64 = vector.shape_cast %63 : vector<1x4x1xf32> to vector<4x1xf32>
    %65 = vector.broadcast %6 : vector<1x256xf32> to vector<4x256xf32>
    %66 = arith.mulf %62, %65 : vector<4x256xf32>
    %67 = vector.broadcast %64 : vector<4x1xf32> to vector<4x256xf32>
    %68 = arith.mulf %67, %66 : vector<4x256xf32>
    %69 = arith.addf %61, %68 : vector<4x256xf32>
    %c239_i32 = arith.constant 239 : i32
    %70 = tpu.dynamic_rotate %8 by %c239_i32 dim 1 : vector<4x256xf32>, i32 -> vector<4x256xf32>
    %71 = vector.extract_strided_slice %9 {offsets = [8, 0, 0], sizes = [1, 4, 1], strides = [1, 1, 1]} : vector<9x4x1xf32> to vector<1x4x1xf32>
    %72 = vector.shape_cast %71 : vector<1x4x1xf32> to vector<4x1xf32>
    %73 = vector.broadcast %7 : vector<1x256xf32> to vector<4x256xf32>
    %74 = arith.mulf %70, %73 : vector<4x256xf32>
    %75 = vector.broadcast %72 : vector<4x1xf32> to vector<4x256xf32>
    %76 = arith.mulf %75, %74 : vector<4x256xf32>
    %77 = arith.addf %69, %76 : vector<4x256xf32>
    %c0_13 = arith.constant 0 : index
    %c0_14 = arith.constant 0 : index
    %78 = vector.load %arg4[%c0_13, %c0_14] : memref<4x1xf32, #tpu.memory_space<vmem>>, vector<4x1xf32>
    %79 = vector.broadcast %78 : vector<4x1xf32> to vector<4x256xf32>
    %80 = arith.addf %77, %79 : vector<4x256xf32>
    %cst = arith.constant 0.000000e+00 : f32
    %81 = vector.broadcast %cst : f32 to vector<4x256xf32>
    %82 = arith.maximumf %80, %81 : vector<4x256xf32>
    %c0_15 = arith.constant 0 : index
    %c0_16 = arith.constant 0 : index
    %c0_17 = arith.constant 0 : index
    %83 = vector.load %arg5[%c0_15, %c0_16, %c0_17] : memref<4x4x1xf32, #tpu.memory_space<vmem>>, vector<4x4x1xf32>
    %84 = vector.extract_strided_slice %83 {offsets = [0, 0, 0], sizes = [1, 4, 1], strides = [1, 1, 1]} : vector<4x4x1xf32> to vector<1x4x1xf32>
    %85 = vector.shape_cast %84 : vector<1x4x1xf32> to vector<4x1xf32>
    %86 = vector.extract_strided_slice %82 {offsets = [0, 0], sizes = [1, 256], strides = [1, 1]} : vector<4x256xf32> to vector<1x256xf32>
    %87 = vector.broadcast %85 : vector<4x1xf32> to vector<4x256xf32>
    %88 = vector.broadcast %86 : vector<1x256xf32> to vector<4x256xf32>
    %89 = arith.mulf %87, %88 : vector<4x256xf32>
    %90 = vector.extract_strided_slice %83 {offsets = [1, 0, 0], sizes = [1, 4, 1], strides = [1, 1, 1]} : vector<4x4x1xf32> to vector<1x4x1xf32>
    %91 = vector.shape_cast %90 : vector<1x4x1xf32> to vector<4x1xf32>
    %92 = vector.extract_strided_slice %82 {offsets = [1, 0], sizes = [1, 256], strides = [1, 1]} : vector<4x256xf32> to vector<1x256xf32>
    %93 = vector.broadcast %91 : vector<4x1xf32> to vector<4x256xf32>
    %94 = vector.broadcast %92 : vector<1x256xf32> to vector<4x256xf32>
    %95 = arith.mulf %93, %94 : vector<4x256xf32>
    %96 = arith.addf %89, %95 : vector<4x256xf32>
    %97 = vector.extract_strided_slice %83 {offsets = [2, 0, 0], sizes = [1, 4, 1], strides = [1, 1, 1]} : vector<4x4x1xf32> to vector<1x4x1xf32>
    %98 = vector.shape_cast %97 : vector<1x4x1xf32> to vector<4x1xf32>
    %99 = vector.extract_strided_slice %82 {offsets = [2, 0], sizes = [1, 256], strides = [1, 1]} : vector<4x256xf32> to vector<1x256xf32>
    %100 = vector.broadcast %98 : vector<4x1xf32> to vector<4x256xf32>
    %101 = vector.broadcast %99 : vector<1x256xf32> to vector<4x256xf32>
    %102 = arith.mulf %100, %101 : vector<4x256xf32>
    %103 = arith.addf %96, %102 : vector<4x256xf32>
    %104 = vector.extract_strided_slice %83 {offsets = [3, 0, 0], sizes = [1, 4, 1], strides = [1, 1, 1]} : vector<4x4x1xf32> to vector<1x4x1xf32>
    %105 = vector.shape_cast %104 : vector<1x4x1xf32> to vector<4x1xf32>
    %106 = vector.extract_strided_slice %82 {offsets = [3, 0], sizes = [1, 256], strides = [1, 1]} : vector<4x256xf32> to vector<1x256xf32>
    %107 = vector.broadcast %105 : vector<4x1xf32> to vector<4x256xf32>
    %108 = vector.broadcast %106 : vector<1x256xf32> to vector<4x256xf32>
    %109 = arith.mulf %107, %108 : vector<4x256xf32>
    %110 = arith.addf %103, %109 : vector<4x256xf32>
    %c0_18 = arith.constant 0 : index
    %c0_19 = arith.constant 0 : index
    %c0_20 = arith.constant 0 : index
    %111 = vector.load %arg6[%c0_18, %c0_19, %c0_20] : memref<9x4x1xf32, #tpu.memory_space<vmem>>, vector<9x4x1xf32>
    %112 = vector.extract_strided_slice %111 {offsets = [4, 0, 0], sizes = [1, 4, 1], strides = [1, 1, 1]} : vector<9x4x1xf32> to vector<1x4x1xf32>
    %113 = vector.shape_cast %112 : vector<1x4x1xf32> to vector<4x1xf32>
    %114 = vector.broadcast %113 : vector<4x1xf32> to vector<4x256xf32>
    %115 = arith.mulf %114, %110 : vector<4x256xf32>
    %c17_i32_21 = arith.constant 17 : i32
    %116 = tpu.dynamic_rotate %110 by %c17_i32_21 dim 1 : vector<4x256xf32>, i32 -> vector<4x256xf32>
    %117 = vector.extract_strided_slice %111 {offsets = [0, 0, 0], sizes = [1, 4, 1], strides = [1, 1, 1]} : vector<9x4x1xf32> to vector<1x4x1xf32>
    %118 = vector.shape_cast %117 : vector<1x4x1xf32> to vector<4x1xf32>
    %119 = vector.broadcast %0 : vector<1x256xf32> to vector<4x256xf32>
    %120 = arith.mulf %116, %119 : vector<4x256xf32>
    %121 = vector.broadcast %118 : vector<4x1xf32> to vector<4x256xf32>
    %122 = arith.mulf %121, %120 : vector<4x256xf32>
    %123 = arith.addf %115, %122 : vector<4x256xf32>
    %c16_i32_22 = arith.constant 16 : i32
    %124 = tpu.dynamic_rotate %110 by %c16_i32_22 dim 1 : vector<4x256xf32>, i32 -> vector<4x256xf32>
    %125 = vector.extract_strided_slice %111 {offsets = [1, 0, 0], sizes = [1, 4, 1], strides = [1, 1, 1]} : vector<9x4x1xf32> to vector<1x4x1xf32>
    %126 = vector.shape_cast %125 : vector<1x4x1xf32> to vector<4x1xf32>
    %127 = vector.broadcast %1 : vector<1x256xf32> to vector<4x256xf32>
    %128 = arith.mulf %124, %127 : vector<4x256xf32>
    %129 = vector.broadcast %126 : vector<4x1xf32> to vector<4x256xf32>
    %130 = arith.mulf %129, %128 : vector<4x256xf32>
    %131 = arith.addf %123, %130 : vector<4x256xf32>
    %c15_i32_23 = arith.constant 15 : i32
    %132 = tpu.dynamic_rotate %110 by %c15_i32_23 dim 1 : vector<4x256xf32>, i32 -> vector<4x256xf32>
    %133 = vector.extract_strided_slice %111 {offsets = [2, 0, 0], sizes = [1, 4, 1], strides = [1, 1, 1]} : vector<9x4x1xf32> to vector<1x4x1xf32>
    %134 = vector.shape_cast %133 : vector<1x4x1xf32> to vector<4x1xf32>
    %135 = vector.broadcast %2 : vector<1x256xf32> to vector<4x256xf32>
    %136 = arith.mulf %132, %135 : vector<4x256xf32>
    %137 = vector.broadcast %134 : vector<4x1xf32> to vector<4x256xf32>
    %138 = arith.mulf %137, %136 : vector<4x256xf32>
    %139 = arith.addf %131, %138 : vector<4x256xf32>
    %c1_i32_24 = arith.constant 1 : i32
    %140 = tpu.dynamic_rotate %110 by %c1_i32_24 dim 1 : vector<4x256xf32>, i32 -> vector<4x256xf32>
    %141 = vector.extract_strided_slice %111 {offsets = [3, 0, 0], sizes = [1, 4, 1], strides = [1, 1, 1]} : vector<9x4x1xf32> to vector<1x4x1xf32>
    %142 = vector.shape_cast %141 : vector<1x4x1xf32> to vector<4x1xf32>
    %143 = vector.broadcast %3 : vector<1x256xf32> to vector<4x256xf32>
    %144 = arith.mulf %140, %143 : vector<4x256xf32>
    %145 = vector.broadcast %142 : vector<4x1xf32> to vector<4x256xf32>
    %146 = arith.mulf %145, %144 : vector<4x256xf32>
    %147 = arith.addf %139, %146 : vector<4x256xf32>
    %c255_i32_25 = arith.constant 255 : i32
    %148 = tpu.dynamic_rotate %110 by %c255_i32_25 dim 1 : vector<4x256xf32>, i32 -> vector<4x256xf32>
    %149 = vector.extract_strided_slice %111 {offsets = [5, 0, 0], sizes = [1, 4, 1], strides = [1, 1, 1]} : vector<9x4x1xf32> to vector<1x4x1xf32>
    %150 = vector.shape_cast %149 : vector<1x4x1xf32> to vector<4x1xf32>
    %151 = vector.broadcast %4 : vector<1x256xf32> to vector<4x256xf32>
    %152 = arith.mulf %148, %151 : vector<4x256xf32>
    %153 = vector.broadcast %150 : vector<4x1xf32> to vector<4x256xf32>
    %154 = arith.mulf %153, %152 : vector<4x256xf32>
    %155 = arith.addf %147, %154 : vector<4x256xf32>
    %c241_i32_26 = arith.constant 241 : i32
    %156 = tpu.dynamic_rotate %110 by %c241_i32_26 dim 1 : vector<4x256xf32>, i32 -> vector<4x256xf32>
    %157 = vector.extract_strided_slice %111 {offsets = [6, 0, 0], sizes = [1, 4, 1], strides = [1, 1, 1]} : vector<9x4x1xf32> to vector<1x4x1xf32>
    %158 = vector.shape_cast %157 : vector<1x4x1xf32> to vector<4x1xf32>
    %159 = vector.broadcast %5 : vector<1x256xf32> to vector<4x256xf32>
    %160 = arith.mulf %156, %159 : vector<4x256xf32>
    %161 = vector.broadcast %158 : vector<4x1xf32> to vector<4x256xf32>
    %162 = arith.mulf %161, %160 : vector<4x256xf32>
    %163 = arith.addf %155, %162 : vector<4x256xf32>
    %c240_i32_27 = arith.constant 240 : i32
    %164 = tpu.dynamic_rotate %110 by %c240_i32_27 dim 1 : vector<4x256xf32>, i32 -> vector<4x256xf32>
    %165 = vector.extract_strided_slice %111 {offsets = [7, 0, 0], sizes = [1, 4, 1], strides = [1, 1, 1]} : vector<9x4x1xf32> to vector<1x4x1xf32>
    %166 = vector.shape_cast %165 : vector<1x4x1xf32> to vector<4x1xf32>
    %167 = vector.broadcast %6 : vector<1x256xf32> to vector<4x256xf32>
    %168 = arith.mulf %164, %167 : vector<4x256xf32>
    %169 = vector.broadcast %166 : vector<4x1xf32> to vector<4x256xf32>
    %170 = arith.mulf %169, %168 : vector<4x256xf32>
    %171 = arith.addf %163, %170 : vector<4x256xf32>
    %c239_i32_28 = arith.constant 239 : i32
    %172 = tpu.dynamic_rotate %110 by %c239_i32_28 dim 1 : vector<4x256xf32>, i32 -> vector<4x256xf32>
    %173 = vector.extract_strided_slice %111 {offsets = [8, 0, 0], sizes = [1, 4, 1], strides = [1, 1, 1]} : vector<9x4x1xf32> to vector<1x4x1xf32>
    %174 = vector.shape_cast %173 : vector<1x4x1xf32> to vector<4x1xf32>
    %175 = vector.broadcast %7 : vector<1x256xf32> to vector<4x256xf32>
    %176 = arith.mulf %172, %175 : vector<4x256xf32>
    %177 = vector.broadcast %174 : vector<4x1xf32> to vector<4x256xf32>
    %178 = arith.mulf %177, %176 : vector<4x256xf32>
    %179 = arith.addf %171, %178 : vector<4x256xf32>
    %c0_29 = arith.constant 0 : index
    %c0_30 = arith.constant 0 : index
    %180 = vector.load %arg7[%c0_29, %c0_30] : memref<4x1xf32, #tpu.memory_space<vmem>>, vector<4x1xf32>
    %181 = vector.broadcast %180 : vector<4x1xf32> to vector<4x256xf32>
    %182 = arith.addf %179, %181 : vector<4x256xf32>
    %cst_31 = arith.constant 0.000000e+00 : f32
    %183 = vector.broadcast %cst_31 : f32 to vector<4x256xf32>
    %184 = arith.maximumf %182, %183 : vector<4x256xf32>
    %c0_32 = arith.constant 0 : index
    %c0_33 = arith.constant 0 : index
    %c0_34 = arith.constant 0 : index
    %185 = vector.load %arg8[%c0_32, %c0_33, %c0_34] : memref<4x4x1xf32, #tpu.memory_space<vmem>>, vector<4x4x1xf32>
    %186 = vector.extract_strided_slice %185 {offsets = [0, 0, 0], sizes = [1, 4, 1], strides = [1, 1, 1]} : vector<4x4x1xf32> to vector<1x4x1xf32>
    %187 = vector.shape_cast %186 : vector<1x4x1xf32> to vector<4x1xf32>
    %188 = vector.extract_strided_slice %184 {offsets = [0, 0], sizes = [1, 256], strides = [1, 1]} : vector<4x256xf32> to vector<1x256xf32>
    %189 = vector.broadcast %187 : vector<4x1xf32> to vector<4x256xf32>
    %190 = vector.broadcast %188 : vector<1x256xf32> to vector<4x256xf32>
    %191 = arith.mulf %189, %190 : vector<4x256xf32>
    %192 = vector.extract_strided_slice %185 {offsets = [1, 0, 0], sizes = [1, 4, 1], strides = [1, 1, 1]} : vector<4x4x1xf32> to vector<1x4x1xf32>
    %193 = vector.shape_cast %192 : vector<1x4x1xf32> to vector<4x1xf32>
    %194 = vector.extract_strided_slice %184 {offsets = [1, 0], sizes = [1, 256], strides = [1, 1]} : vector<4x256xf32> to vector<1x256xf32>
    %195 = vector.broadcast %193 : vector<4x1xf32> to vector<4x256xf32>
    %196 = vector.broadcast %194 : vector<1x256xf32> to vector<4x256xf32>
    %197 = arith.mulf %195, %196 : vector<4x256xf32>
    %198 = arith.addf %191, %197 : vector<4x256xf32>
    %199 = vector.extract_strided_slice %185 {offsets = [2, 0, 0], sizes = [1, 4, 1], strides = [1, 1, 1]} : vector<4x4x1xf32> to vector<1x4x1xf32>
    %200 = vector.shape_cast %199 : vector<1x4x1xf32> to vector<4x1xf32>
    %201 = vector.extract_strided_slice %184 {offsets = [2, 0], sizes = [1, 256], strides = [1, 1]} : vector<4x256xf32> to vector<1x256xf32>
    %202 = vector.broadcast %200 : vector<4x1xf32> to vector<4x256xf32>
    %203 = vector.broadcast %201 : vector<1x256xf32> to vector<4x256xf32>
    %204 = arith.mulf %202, %203 : vector<4x256xf32>
    %205 = arith.addf %198, %204 : vector<4x256xf32>
    %206 = vector.extract_strided_slice %185 {offsets = [3, 0, 0], sizes = [1, 4, 1], strides = [1, 1, 1]} : vector<4x4x1xf32> to vector<1x4x1xf32>
    %207 = vector.shape_cast %206 : vector<1x4x1xf32> to vector<4x1xf32>
    %208 = vector.extract_strided_slice %184 {offsets = [3, 0], sizes = [1, 256], strides = [1, 1]} : vector<4x256xf32> to vector<1x256xf32>
    %209 = vector.broadcast %207 : vector<4x1xf32> to vector<4x256xf32>
    %210 = vector.broadcast %208 : vector<1x256xf32> to vector<4x256xf32>
    %211 = arith.mulf %209, %210 : vector<4x256xf32>
    %212 = arith.addf %205, %211 : vector<4x256xf32>
    %c0_35 = arith.constant 0 : index
    %c0_36 = arith.constant 0 : index
    %213 = vector.load %arg9[%c0_35, %c0_36] : memref<4x256xf32, #tpu.memory_space<vmem>>, vector<4x256xf32>
    tpu.vector_store %arg9[%c0_35, %c0_36], %212 {strides = array<i32>} : memref<4x256xf32, #tpu.memory_space<vmem>>, vector<4x256xf32>,
    return
  }
  func.func @transform_0(%arg0: i32) -> (i32, i32) {
    %c0_i32 = arith.constant 0 : i32
    %c0_i32_0 = arith.constant 0 : i32
    return %c0_i32, %arg0 : i32, i32
  }
  func.func @transform_1(%arg0: i32) -> (i32, i32) {
    %c0_i32 = arith.constant 0 : i32
    %c0_i32_0 = arith.constant 0 : i32
    %c0_i32_1 = arith.constant 0 : i32
    return %c0_i32, %c0_i32_0 : i32, i32
  }
  func.func @transform_2(%arg0: i32) -> (i32, i32, i32) {
    %c0_i32 = arith.constant 0 : i32
    %c0_i32_0 = arith.constant 0 : i32
    %c0_i32_1 = arith.constant 0 : i32
    %c0_i32_2 = arith.constant 0 : i32
    return %c0_i32, %c0_i32_0, %c0_i32_1 : i32, i32, i32
  }
  func.func @transform_3(%arg0: i32) -> (i32, i32) {
    %c0_i32 = arith.constant 0 : i32
    %c0_i32_0 = arith.constant 0 : i32
    %c0_i32_1 = arith.constant 0 : i32
    return %c0_i32, %c0_i32_0 : i32, i32
  }
  func.func @transform_4(%arg0: i32) -> (i32, i32, i32) {
    %c0_i32 = arith.constant 0 : i32
    %c0_i32_0 = arith.constant 0 : i32
    %c0_i32_1 = arith.constant 0 : i32
    %c0_i32_2 = arith.constant 0 : i32
    return %c0_i32, %c0_i32_0, %c0_i32_1 : i32, i32, i32
  }
  func.func @transform_5(%arg0: i32) -> (i32, i32, i32) {
    %c0_i32 = arith.constant 0 : i32
    %c0_i32_0 = arith.constant 0 : i32
    %c0_i32_1 = arith.constant 0 : i32
    %c0_i32_2 = arith.constant 0 : i32
    return %c0_i32, %c0_i32_0, %c0_i32_1 : i32, i32, i32
  }
  func.func @transform_6(%arg0: i32) -> (i32, i32) {
    %c0_i32 = arith.constant 0 : i32
    %c0_i32_0 = arith.constant 0 : i32
    %c0_i32_1 = arith.constant 0 : i32
    return %c0_i32, %c0_i32_0 : i32, i32
  }
  func.func @transform_7(%arg0: i32) -> (i32, i32, i32) {
    %c0_i32 = arith.constant 0 : i32
    %c0_i32_0 = arith.constant 0 : i32
    %c0_i32_1 = arith.constant 0 : i32
    %c0_i32_2 = arith.constant 0 : i32
    return %c0_i32, %c0_i32_0, %c0_i32_1 : i32, i32, i32
  }
  func.func @transform_8(%arg0: i32) -> (i32, i32) {
    %c0_i32 = arith.constant 0 : i32
    %c0_i32_0 = arith.constant 0 : i32
    return %c0_i32, %arg0 : i32, i32
  }
}

</mosaic_0001>

<llo_original>
// kernel: tpu_custom_call.1
$region0: #{tpu_custom_call.1}
  #allocation0 [shape = 'u32[]', space=smem, size = 0x4, offset = 0x4, fixed_abs, tag = 'smem constant byte address 0x4 - core index']
  #allocation1 [shape = 'u32[144,128]{1,0:T(1,128)}', space=vmem, size = 0x12000, scoped, tag = 'internal scratch']
  %s0 = inlined_call_operand.hbm [shape: f32[4,512], index: 0, kind: input, shape index: {}, may-alias: {0,8}]
  %s1 = inlined_call_operand.vmem [shape: f32[9,256], index: 1, kind: input, shape index: {}]
  %s2 = inlined_call_operand.vmem [shape: f32[9,4,1], index: 2, kind: input, shape index: {}]
  %s3 = inlined_call_operand.vmem [shape: f32[4,1], index: 3, kind: input, shape index: {}]
  %s4 = inlined_call_operand.vmem [shape: f32[4,4,1], index: 4, kind: input, shape index: {}]
  %s5 = inlined_call_operand.vmem [shape: f32[9,4,1], index: 5, kind: input, shape index: {}]
  %s6 = inlined_call_operand.vmem [shape: f32[4,1], index: 6, kind: input, shape index: {}]
  %s7 = inlined_call_operand.vmem [shape: f32[4,4,1], index: 7, kind: input, shape index: {}]
  %s8 = inlined_call_operand.hbm [shape: f32[4,512], index: 8, kind: output, shape index: {}, may-alias: {0,8}]
  %s9 = sld [smem:[#allocation0]]
  $region69: #{tpu_custom_call.1} parent=0
    _
  %s11 = ssub.s32 1, %s9
  %s12 = scalar_select 0, %s11, %s9
  $region1: #{tpu_custom_call.1} parent=0
    #allocation2 [shape = 'u8[8192]{0}', space=vmem, size = 0x2000, scoped, tag = 'input window, operand 0']
    #allocation3 [shape = 's32[2]{0}', space=sflag, size = 0x8, scoped, tag = 'scoped memory for tpu_custom_call.1']
    #allocation4 [shape = 's32[2]{0}', space=sflag, size = 0x8, scoped, tag = 'scoped memory for tpu_custom_call.1']
    #allocation5 [shape = 'u8[8192]{0}', space=vmem, size = 0x2000, scoped, tag = 'output window, operand 0']
    %13 = vsyncpa [#allocation3], 0
    %s14 = scalar_lea.sflag [#allocation3], 1
    %15 = vsyncpa %s14, 0
    %16 = vsyncpa [#allocation4], 0
    %s17 = scalar_lea.sflag [#allocation4], 1
    %18 = vsyncpa %s17, 0
    loop: start=0, step=1, limit=4
    $region2: #{tpu_custom_call.1} parent=1 // loop_pre_header
      _
    $region3: #{tpu_custom_call.1} parent=1 // loop_header
      %s20 = sphi 0, %s24
      %p21 = scmp.ge.s32.totalorder %s20, 4
      %s30 = sphi 0, %s32
      %s33 = sphi 0, %s30
      %s34 = sphi 0, %s33
      %s50 = sphi 0, %s34
      %s54 = sphi 0, %s54
      %s56 = sphi 0, %s54
      %s57 = sphi 0, %s56
      %s71 = sphi 0, %s57
      %s75 = sphi 0, %s75
      %s77 = sphi 0, %s75
      %s78 = sphi 0, %s77
      %s92 = sphi 0, %s78
      %s96 = sphi 0, %s96
      %s98 = sphi 0, %s96
      %s99 = sphi 0, %s98
      %s113 = sphi 0, %s99
      %s117 = sphi 0, %s117
      %s119 = sphi 0, %s117
      %s120 = sphi 0, %s119
      %s134 = sphi 0, %s120
      %s138 = sphi 0, %s138
      %s140 = sphi 0, %s138
      %s141 = sphi 0, %s140
      %s155 = sphi 0, %s141
      %s159 = sphi 0, %s159
      %s161 = sphi 0, %s159
      %s162 = sphi 0, %s161
      %s176 = sphi 0, %s162
      %s180 = sphi 0, %s180
      %s182 = sphi 0, %s180
      %s183 = sphi 0, %s182
      %s197 = sphi 0, %s183
      %s203 = sphi 0, %s205
      %s206 = sphi 0, %s203
      %s207 = sphi 0, %s206
      %s223 = sphi 0, %s207
    $region4: #{tpu_custom_call.1} parent=1 // loop_header_branch
      %23 = sbr.rel (%p21) target = $region8
    $region5: #{tpu_custom_call.1} parent=1 // loop_body
      %s25 = ssub.s32 %s20, 1
      %s26 = ssub.s32 %s20, 2
      %s27 = sadd.s32 %s20, 1
      %s28 = ssub.s32 %s20, %s27
      %p29 = scmp.eq.s32.totalorder %s28, 0
      %s31 = sadd.s32 %s30, 1
      %s32 = scalar_select %p29, %s30, %s31
      %p35 = pneg %p29
      %p36 = scmp.eq.s32.totalorder %s20, 1
      %p37 = por %p35, %p36
      %p38 = scmp.ne.s32.totalorder %s30, %s33
      %p39 = scmp.eq.s32.totalorder %s20, 0
      %p40 = por %p38, %p39
      %p41 = scmp.ne.s32.totalorder %s30, %s33
      %p42 = scmp.eq.s32.totalorder %s25, 1
      %p43 = por %p41, %p42
      %p44 = scmp.ne.s32.totalorder %s33, %s34
      %p45 = scmp.eq.s32.totalorder %s25, 0
      %p46 = por %p44, %p45
      %p47 = scmp.ne.s32.totalorder %s33, %s34
      %p48 = scmp.eq.s32.totalorder %s26, 1
      %p49 = por %p47, %p48
      %p51 = scmp.ne.s32.totalorder %s34, %s50
      %p52 = scmp.eq.s32.totalorder %s26, 0
      %p53 = por %p51, %p52
      %s55 = sadd.s32 %s54, 1
      %p58 = scmp.eq.s32.totalorder %s20, 1
      %p59 = scmp.ne.s32.totalorder %s54, %s56
      %p60 = scmp.eq.s32.totalorder %s20, 0
      %p61 = por %p59, %p60
      %p62 = scmp.ne.s32.totalorder %s54, %s56
      %p63 = scmp.eq.s32.totalorder %s25, 1
      %p64 = por %p62, %p63
      %p65 = scmp.ne.s32.totalorder %s56, %s57
      %p66 = scmp.eq.s32.totalorder %s25, 0
      %p67 = por %p65, %p66
      %p68 = scmp.ne.s32.totalorder %s56, %s57
      %p69 = scmp.eq.s32.totalorder %s26, 1
      %p70 = por %p68, %p69
      %p72 = scmp.ne.s32.totalorder %s57, %s71
      %p73 = scmp.eq.s32.totalorder %s26, 0
      %p74 = por %p72, %p73
      %s76 = sadd.s32 %s75, 1
      %p79 = scmp.eq.s32.totalorder %s20, 1
      %p80 = scmp.ne.s32.totalorder %s75, %s77
      %p81 = scmp.eq.s32.totalorder %s20, 0
      %p82 = por %p80, %p81
      %p83 = scmp.ne.s32.totalorder %s75, %s77
      %p84 = scmp.eq.s32.totalorder %s25, 1
      %p85 = por %p83, %p84
      %p86 = scmp.ne.s32.totalorder %s77, %s78
      %p87 = scmp.eq.s32.totalorder %s25, 0
      %p88 = por %p86, %p87
      %p89 = scmp.ne.s32.totalorder %s77, %s78
      %p90 = scmp.eq.s32.totalorder %s26, 1
      %p91 = por %p89, %p90
      %p93 = scmp.ne.s32.totalorder %s78, %s92
      %p94 = scmp.eq.s32.totalorder %s26, 0
      %p95 = por %p93, %p94
      %s97 = sadd.s32 %s96, 1
      %p100 = scmp.eq.s32.totalorder %s20, 1
      %p101 = scmp.ne.s32.totalorder %s96, %s98
      %p102 = scmp.eq.s32.totalorder %s20, 0
      %p103 = por %p101, %p102
      %p104 = scmp.ne.s32.totalorder %s96, %s98
      %p105 = scmp.eq.s32.totalorder %s25, 1
      %p106 = por %p104, %p105
      %p107 = scmp.ne.s32.totalorder %s98, %s99
      %p108 = scmp.eq.s32.totalorder %s25, 0
      %p109 = por %p107, %p108
      %p110 = scmp.ne.s32.totalorder %s98, %s99
      %p111 = scmp.eq.s32.totalorder %s26, 1
      %p112 = por %p110, %p111
      %p114 = scmp.ne.s32.totalorder %s99, %s113
      %p115 = scmp.eq.s32.totalorder %s26, 0
      %p116 = por %p114, %p115
      %s118 = sadd.s32 %s117, 1
      %p121 = scmp.eq.s32.totalorder %s20, 1
      %p122 = scmp.ne.s32.totalorder %s117, %s119
      %p123 = scmp.eq.s32.totalorder %s20, 0
      %p124 = por %p122, %p123
      %p125 = scmp.ne.s32.totalorder %s117, %s119
      %p126 = scmp.eq.s32.totalorder %s25, 1
      %p127 = por %p125, %p126
      %p128 = scmp.ne.s32.totalorder %s119, %s120
      %p129 = scmp.eq.s32.totalorder %s25, 0
      %p130 = por %p128, %p129
      %p131 = scmp.ne.s32.totalorder %s119, %s120
      %p132 = scmp.eq.s32.totalorder %s26, 1
      %p133 = por %p131, %p132
      %p135 = scmp.ne.s32.totalorder %s120, %s134
      %p136 = scmp.eq.s32.totalorder %s26, 0
      %p137 = por %p135, %p136
      %s139 = sadd.s32 %s138, 1
      %p142 = scmp.eq.s32.totalorder %s20, 1
      %p143 = scmp.ne.s32.totalorder %s138, %s140
      %p144 = scmp.eq.s32.totalorder %s20, 0
      %p145 = por %p143, %p144
      %p146 = scmp.ne.s32.totalorder %s138, %s140
      %p147 = scmp.eq.s32.totalorder %s25, 1
      %p148 = por %p146, %p147
      %p149 = scmp.ne.s32.totalorder %s140, %s141
      %p150 = scmp.eq.s32.totalorder %s25, 0
      %p151 = por %p149, %p150
      %p152 = scmp.ne.s32.totalorder %s140, %s141
      %p153 = scmp.eq.s32.totalorder %s26, 1
      %p154 = por %p152, %p153
      %p156 = scmp.ne.s32.totalorder %s141, %s155
      %p157 = scmp.eq.s32.totalorder %s26, 0
      %p158 = por %p156, %p157
      %s160 = sadd.s32 %s159, 1
      %p163 = scmp.eq.s32.totalorder %s20, 1
      %p164 = scmp.ne.s32.totalorder %s159, %s161
      %p165 = scmp.eq.s32.totalorder %s20, 0
      %p166 = por %p164, %p165
      %p167 = scmp.ne.s32.totalorder %s159, %s161
      %p168 = scmp.eq.s32.totalorder %s25, 1
      %p169 = por %p167, %p168
      %p170 = scmp.ne.s32.totalorder %s161, %s162
      %p171 = scmp.eq.s32.totalorder %s25, 0
      %p172 = por %p170, %p171
      %p173 = scmp.ne.s32.totalorder %s161, %s162
      %p174 = scmp.eq.s32.totalorder %s26, 1
      %p175 = por %p173, %p174
      %p177 = scmp.ne.s32.totalorder %s162, %s176
      %p178 = scmp.eq.s32.totalorder %s26, 0
      %p179 = por %p177, %p178
      %s181 = sadd.s32 %s180, 1
      %p184 = scmp.eq.s32.totalorder %s20, 1
      %p185 = scmp.ne.s32.totalorder %s180, %s182
      %p186 = scmp.eq.s32.totalorder %s20, 0
      %p187 = por %p185, %p186
      %p188 = scmp.ne.s32.totalorder %s180, %s182
      %p189 = scmp.eq.s32.totalorder %s25, 1
      %p190 = por %p188, %p189
      %p191 = scmp.ne.s32.totalorder %s182, %s183
      %p192 = scmp.eq.s32.totalorder %s25, 0
      %p193 = por %p191, %p192
      %p194 = scmp.ne.s32.totalorder %s182, %s183
      %p195 = scmp.eq.s32.totalorder %s26, 1
      %p196 = por %p194, %p195
      %p198 = scmp.ne.s32.totalorder %s183, %s197
      %p199 = scmp.eq.s32.totalorder %s26, 0
      %p200 = por %p198, %p199
      %s201 = ssub.s32 %s20, %s27
      %p202 = scmp.eq.s32.totalorder %s201, 0
      %s204 = sadd.s32 %s203, 1
      %s205 = scalar_select %p202, %s203, %s204
      %p208 = pneg %p202
      %p209 = scmp.eq.s32.totalorder %s20, 1
      %p210 = por %p208, %p209
      %p211 = scmp.ne.s32.totalorder %s203, %s206
      %p212 = scmp.eq.s32.totalorder %s20, 0
      %p213 = por %p211, %p212
      %p214 = scmp.ne.s32.totalorder %s203, %s206
      %p215 = scmp.eq.s32.totalorder %s25, 1
      %p216 = por %p214, %p215
      %p217 = scmp.ne.s32.totalorder %s206, %s207
      %p218 = scmp.eq.s32.totalorder %s25, 0
      %p219 = por %p217, %p218
      %p220 = scmp.ne.s32.totalorder %s206, %s207
      %p221 = scmp.eq.s32.totalorder %s26, 1
      %p222 = por %p220, %p221
      %p224 = scmp.ne.s32.totalorder %s207, %s223
      %p225 = scmp.eq.s32.totalorder %s26, 0
      %p226 = por %p224, %p225
      %p227 = scmp.le.s32.totalorder 1, %s20
      %p228 = scmp.lt.s32.totalorder %s20, 3
      %p229 = pnand %p227, %p228
      %p230 = pneg %p229
      // Predicated region
      $region9: #{tpu_custom_call.1} parent=5 // pred_check
        _
      $region10: #{tpu_custom_call.1} parent=5 // pred_check_branch
        %232 = sbr.rel (%p229) target = $region12
      $region11: #{tpu_custom_call.1} parent=5 // pred_region
        %s233 = ssub.s32 %s20, 1
        // Predicated region
        $region13: #{tpu_custom_call.1} parent=11 // pred_check
          %p234 = pneg %p67
        $region14: #{tpu_custom_call.1} parent=11 // pred_check_branch
          %236 = sbr.rel (%p234) target = $region16
        $region15: #{tpu_custom_call.1} parent=11 // pred_region
          _
        $region16: #{tpu_custom_call.1} parent=11 // pred_fallthru
          _
        // Predicated region
        $region17: #{tpu_custom_call.1} parent=11 // pred_check
          %p237 = pneg %p88
        $region18: #{tpu_custom_call.1} parent=11 // pred_check_branch
          %239 = sbr.rel (%p237) target = $region20
        $region19: #{tpu_custom_call.1} parent=11 // pred_region
          _
        $region20: #{tpu_custom_call.1} parent=11 // pred_fallthru
          _
        // Predicated region
        $region21: #{tpu_custom_call.1} parent=11 // pred_check
          %p240 = pneg %p109
        $region22: #{tpu_custom_call.1} parent=11 // pred_check_branch
          %242 = sbr.rel (%p240) target = $region24
        $region23: #{tpu_custom_call.1} parent=11 // pred_region
          _
        $region24: #{tpu_custom_call.1} parent=11 // pred_fallthru
          _
        // Predicated region
        $region25: #{tpu_custom_call.1} parent=11 // pred_check
          %p243 = pneg %p130
        $region26: #{tpu_custom_call.1} parent=11 // pred_check_branch
          %245 = sbr.rel (%p243) target = $region28
        $region27: #{tpu_custom_call.1} parent=11 // pred_region
          _
        $region28: #{tpu_custom_call.1} parent=11 // pred_fallthru
          _
        // Predicated region
        $region29: #{tpu_custom_call.1} parent=11 // pred_check
          %p246 = pneg %p151
        $region30: #{tpu_custom_call.1} parent=11 // pred_check_branch
          %248 = sbr.rel (%p246) target = $region32
        $region31: #{tpu_custom_call.1} parent=11 // pred_region
          _
        $region32: #{tpu_custom_call.1} parent=11 // pred_fallthru
          _
        // Predicated region
        $region33: #{tpu_custom_call.1} parent=11 // pred_check
          %p249 = pneg %p172
        $region34: #{tpu_custom_call.1} parent=11 // pred_check_branch
          %251 = sbr.rel (%p249) target = $region36
        $region35: #{tpu_custom_call.1} parent=11 // pred_region
          _
        $region36: #{tpu_custom_call.1} parent=11 // pred_fallthru
          _
        // Predicated region
        $region37: #{tpu_custom_call.1} parent=11 // pred_check
          %p252 = pneg %p193
        $region38: #{tpu_custom_call.1} parent=11 // pred_check_branch
          %254 = sbr.rel (%p252) target = $region40
        $region39: #{tpu_custom_call.1} parent=11 // pred_region
          _
        $region40: #{tpu_custom_call.1} parent=11 // pred_fallthru
          _
      $region12: #{tpu_custom_call.1} parent=5 // pred_fallthru
        _
      %p255 = scmp.lt.s32.totalorder %s20, 2
      // Predicated region
      $region41: #{tpu_custom_call.1} parent=5 // pred_check
        %p256 = pneg %p255
      $region42: #{tpu_custom_call.1} parent=5 // pred_check_branch
        %258 = sbr.rel (%p256) target = $region44
      $region43: #{tpu_custom_call.1} parent=5 // pred_region
        // Predicated region
        $region45: #{tpu_custom_call.1} parent=43 // pred_check
          %p259 = pneg %p40
        $region46: #{tpu_custom_call.1} parent=43 // pred_check_branch
          %261 = sbr.rel (%p259) target = $region48
        $region47: #{tpu_custom_call.1} parent=43 // pred_region
          %s262 = sand.u32 %s30, 1
          %s263 = scalar_lea.sflag [#allocation3], %s262
          %s264 = sand.u32 %s30, 1
          %s265 = smul.addr %s264, 8
          %s266 = scalar_lea.vmem [#allocation2], %s265
          %s267 = smul.u32 2, %s20
          %s269 = ssub.s32 128, 128
          %270 = vsyncadd %s263, %s269
          %s271 = smul.addr %s267, 64
          %s272 = scalar_lea.hbm %s0, %s271
          %s274 = sshll.u32 %s266, 4
          %s275 = int_to_ptr.vmem [resolvable:$true] %s274
          %277 = dma.hbm_to_vmem [thread:$0]  %s272, 128, %s275, %s263
        $region48: #{tpu_custom_call.1} parent=43 // pred_fallthru
          _
      $region44: #{tpu_custom_call.1} parent=5 // pred_fallthru
        _
      %p278 = scmp.le.s32.totalorder 1, %s20
      %p279 = scmp.lt.s32.totalorder %s20, 3
      %p280 = pnand %p278, %p279
      %p281 = pneg %p280
      // Predicated region
      $region49: #{tpu_custom_call.1} parent=5 // pred_check
        _
      $region50: #{tpu_custom_call.1} parent=5 // pred_check_branch
        %283 = sbr.rel (%p280) target = $region52
      $region51: #{tpu_custom_call.1} parent=5 // pred_region
        %s284 = ssub.s32 %s20, 1
        %s285 = sand.u32 %s33, 1
        %s286 = scalar_lea.sflag [#allocation3], %s285
        %s287 = sand.u32 %s33, 1
        %s288 = smul.addr %s287, 8
        %s289 = scalar_lea.vmem [#allocation2], %s288
        // Predicated region
        $region53: #{tpu_custom_call.1} parent=51 // pred_check
          %p290 = pneg %p46
        $region54: #{tpu_custom_call.1} parent=51 // pred_check_branch
          %292 = sbr.rel (%p290) target = $region56
        $region55: #{tpu_custom_call.1} parent=51 // pred_region
          %293 = dma.done %s286, 128
        $region56: #{tpu_custom_call.1} parent=51 // pred_fallthru
          _
        %s294 = sand.u32 %s33, 1
        %s295 = scalar_lea.sflag [#allocation3], %s294
        %s296 = sand.u32 %s33, 1
        %s297 = smul.addr %s296, 8
        %s298 = scalar_lea.vmem [#allocation2], %s297
        %p299 = pneg %p46
        %p300 = pneg %p43
        %p301 = pneg %p67
        %p302 = pneg %p64
        %p303 = pneg %p88
        %p304 = pneg %p85
        %p305 = pneg %p109
        %p306 = pneg %p106
        %p307 = pneg %p130
        %p308 = pneg %p127
        %p309 = pneg %p151
        %p310 = pneg %p148
        %p311 = pneg %p172
        %p312 = pneg %p169
        %p313 = pneg %p193
        %p314 = pneg %p190
        %p315 = pneg %p219
        %p316 = pneg %p216
        %s317 = sand.u32 %s206, 1
        %s318 = scalar_lea.sflag [#allocation4], %s317
        %s319 = sand.u32 %s206, 1
        %s320 = smul.addr %s319, 8
        %s321 = scalar_lea.vmem [#allocation5], %s320
        %s322 = smul.u32 2, %s25
        %s323 = smul.u32 2, %s25
        %v324 = vld [vmem:[%s1] ss:$8 sm:$0x3]
        %s325 = scalar_lea.vmem %s1, 1
        %v326 = vld [vmem:[%s325] ss:$8 sm:$0x3]
        %s327 = scalar_lea.vmem %s1, 2
        %v328 = vld [vmem:[%s327] ss:$8 sm:$0x3]
        %s329 = scalar_lea.vmem %s1, 3
        %v330 = vld [vmem:[%s329] ss:$8 sm:$0x3]
        %s331 = scalar_lea.vmem %s1, 5
        %v332 = vld [vmem:[%s331] ss:$8 sm:$0x3]
        %s333 = scalar_lea.vmem %s1, 6
        %v334 = vld [vmem:[%s333] ss:$8 sm:$0x3]
        %s335 = scalar_lea.vmem %s1, 7
        %v336 = vld [vmem:[%s335] ss:$8 sm:$0x3]
        %s337 = scalar_lea.vmem %s1, 16
        %v338 = vld [vmem:[%s337] ss:$8 sm:$0x3]
        %v339 = vld [vmem:[%s289] sm:$0xff]
        %v340 = vld [vmem:[%s2] sm:$0xf]
        %v341 = vld [vmem:[%s2 + $0x4] sm:$0xf]
        %v342 = vld [vmem:[%s2 + $0x8] sm:$0xf]
        %v343 = vld [vmem:[%s2 + $0xc] sm:$0xf]
        %v344 = vld [vmem:[%s2 + $0x10] sm:$0xf]
        %v345 = vld [vmem:[%s2 + $0x14] sm:$0xf]
        %v346 = vld [vmem:[%s2 + $0x18] sm:$0xf]
        %v347 = vld [vmem:[%s2 + $0x1c] sm:$0xf]
        %v348 = vld [vmem:[%s2 + $0x20] sm:$0xf]
        %350 = vset.pattern.permute.xlu0 0
        %351 = vperm.xlu0 %350, %v344
        %v352 = vpop.permute.xlu0 %351
        %v355 = vcombine.high %v339, %v339
        %v357 = vmul.f32 %v352, %v339
        %v358 = vmul.f32 %v352, %v355
        %359 = vrot.lane.b32.xlu0 %v339, 17
        %v360 = vpop.permute.xlu0 %359
        %361 = vrot.lane.b32.xlu0 %v355, 17
        %v362 = vpop.permute.xlu0 %361
        %v363 = vlaneseq
        %v364 = vand.u32 %v363, 127
        %vm365 = vcmp.lt.s32.totalorder %v364, 17
        %v366 = vsel %vm365, %v360, %v362
        %v367 = vsel %vm365, %v362, %v360
        %v369 = vlaneseq
        %v370 = vshrl.u32 %v369, 7
        %v371 = vsub.s32 0, %v370
        %v372 = vrot.slane %v324, %v371
        %v373 = vlaneseq
        %v374 = vshrl.u32 %v373, 7
        %v375 = vsub.s32 1, %v374
        %v376 = vrot.slane %v324, %v375
        %v379 = vmul.f32 %v367, %v372
        %v380 = vmul.f32 %v366, %v376
        %382 = vset.pattern.permute.xlu0 0
        %383 = vperm.xlu0 %382, %v340
        %v384 = vpop.permute.xlu0 %383
        %v386 = vmul.f32 %v384, %v379
        %v387 = vmul.f32 %v384, %v380
        %v388 = vadd.f32 %v357, %v386
        %v389 = vadd.f32 %v358, %v387
        %390 = vrot.lane.b32.xlu0 %v339, 16
        %v391 = vpop.permute.xlu0 %390
        %392 = vrot.lane.b32.xlu0 %v355, 16
        %v393 = vpop.permute.xlu0 %392
        %vm394 = vcmp.lt.s32.totalorder %v364, 16
        %v395 = vsel %vm394, %v391, %v393
        %v396 = vsel %vm394, %v393, %v391
        %v398 = vlaneseq
        %v399 = vshrl.u32 %v398, 7
        %v400 = vsub.s32 0, %v399
        %v401 = vrot.slane %v326, %v400
        %v402 = vlaneseq
        %v403 = vshrl.u32 %v402, 7
        %v404 = vsub.s32 1, %v403
        %v405 = vrot.slane %v326, %v404
        %v408 = vmul.f32 %v396, %v401
        %v409 = vmul.f32 %v395, %v405
        %411 = vset.pattern.permute.xlu0 0
        %412 = vperm.xlu0 %411, %v341
        %v413 = vpop.permute.xlu0 %412
        %v415 = vmul.f32 %v413, %v408
        %v416 = vmul.f32 %v413, %v409
        %v417 = vadd.f32 %v388, %v415
        %v418 = vadd.f32 %v389, %v416
        %419 = vrot.lane.b32.xlu0 %v339, 15
        %v420 = vpop.permute.xlu0 %419
        %421 = vrot.lane.b32.xlu0 %v355, 15
        %v422 = vpop.permute.xlu0 %421
        %vm423 = vcmp.lt.s32.totalorder %v364, 15
        %v424 = vsel %vm423, %v420, %v422
        %v425 = vsel %vm423, %v422, %v420
        %v427 = vlaneseq
        %v428 = vshrl.u32 %v427, 7
        %v429 = vsub.s32 0, %v428
        %v430 = vrot.slane %v328, %v429
        %v431 = vlaneseq
        %v432 = vshrl.u32 %v431, 7
        %v433 = vsub.s32 1, %v432
        %v434 = vrot.slane %v328, %v433
        %v437 = vmul.f32 %v425, %v430
        %v438 = vmul.f32 %v424, %v434
        %440 = vset.pattern.permute.xlu0 0
        %441 = vperm.xlu0 %440, %v342
        %v442 = vpop.permute.xlu0 %441
        %v444 = vmul.f32 %v442, %v437
        %v445 = vmul.f32 %v442, %v438
        %v446 = vadd.f32 %v417, %v444
        %v447 = vadd.f32 %v418, %v445
        %448 = vrot.lane.b32.xlu0 %v339, 1
        %v449 = vpop.permute.xlu0 %448
        %450 = vrot.lane.b32.xlu0 %v355, 1
        %v451 = vpop.permute.xlu0 %450
        %vm452 = vcmp.lt.s32.totalorder %v364, 1
        %v453 = vsel %vm452, %v449, %v451
        %v454 = vsel %vm452, %v451, %v449
        %v456 = vlaneseq
        %v457 = vshrl.u32 %v456, 7
        %v458 = vsub.s32 0, %v457
        %v459 = vrot.slane %v330, %v458
        %v460 = vlaneseq
        %v461 = vshrl.u32 %v460, 7
        %v462 = vsub.s32 1, %v461
        %v463 = vrot.slane %v330, %v462
        %v466 = vmul.f32 %v454, %v459
        %v467 = vmul.f32 %v453, %v463
        %469 = vset.pattern.permute.xlu0 0
        %470 = vperm.xlu0 %469, %v343
        %v471 = vpop.permute.xlu0 %470
        %v473 = vmul.f32 %v471, %v466
        %v474 = vmul.f32 %v471, %v467
        %v475 = vadd.f32 %v446, %v473
        %v476 = vadd.f32 %v447, %v474
        %477 = vrot.lane.b32.xlu0 %v339, 127
        %v478 = vpop.permute.xlu0 %477
        %479 = vrot.lane.b32.xlu0 %v355, 127
        %v480 = vpop.permute.xlu0 %479
        %vm481 = vcmp.lt.s32.totalorder %v364, 127
        %v482 = vsel %vm481, %v478, %v480
        %v483 = vsel %vm481, %v480, %v478
        %v485 = vlaneseq
        %v486 = vshrl.u32 %v485, 7
        %v487 = vsub.s32 0, %v486
        %v488 = vrot.slane %v332, %v487
        %v489 = vlaneseq
        %v490 = vshrl.u32 %v489, 7
        %v491 = vsub.s32 1, %v490
        %v492 = vrot.slane %v332, %v491
        %v495 = vmul.f32 %v482, %v488
        %v496 = vmul.f32 %v483, %v492
        %498 = vset.pattern.permute.xlu0 0
        %499 = vperm.xlu0 %498, %v345
        %v500 = vpop.permute.xlu0 %499
        %v502 = vmul.f32 %v500, %v495
        %v503 = vmul.f32 %v500, %v496
        %v504 = vadd.f32 %v475, %v502
        %v505 = vadd.f32 %v476, %v503
        %506 = vrot.lane.b32.xlu0 %v339, 113
        %v507 = vpop.permute.xlu0 %506
        %508 = vrot.lane.b32.xlu0 %v355, 113
        %v509 = vpop.permute.xlu0 %508
        %vm510 = vcmp.lt.s32.totalorder %v364, 113
        %v511 = vsel %vm510, %v507, %v509
        %v512 = vsel %vm510, %v509, %v507
        %v514 = vlaneseq
        %v515 = vshrl.u32 %v514, 7
        %v516 = vsub.s32 0, %v515
        %v517 = vrot.slane %v334, %v516
        %v518 = vlaneseq
        %v519 = vshrl.u32 %v518, 7
        %v520 = vsub.s32 1, %v519
        %v521 = vrot.slane %v334, %v520
        %v524 = vmul.f32 %v511, %v517
        %v525 = vmul.f32 %v512, %v521
        %527 = vset.pattern.permute.xlu0 0
        %528 = vperm.xlu0 %527, %v346
        %v529 = vpop.permute.xlu0 %528
        %v531 = vmul.f32 %v529, %v524
        %v532 = vmul.f32 %v529, %v525
        %v533 = vadd.f32 %v504, %v531
        %v534 = vadd.f32 %v505, %v532
        %535 = vrot.lane.b32.xlu0 %v339, 112
        %v536 = vpop.permute.xlu0 %535
        %537 = vrot.lane.b32.xlu0 %v355, 112
        %v538 = vpop.permute.xlu0 %537
        %vm539 = vcmp.lt.s32.totalorder %v364, 112
        %v540 = vsel %vm539, %v536, %v538
        %v541 = vsel %vm539, %v538, %v536
        %v543 = vlaneseq
        %v544 = vshrl.u32 %v543, 7
        %v545 = vsub.s32 0, %v544
        %v546 = vrot.slane %v336, %v545
        %v547 = vlaneseq
        %v548 = vshrl.u32 %v547, 7
        %v549 = vsub.s32 1, %v548
        %v550 = vrot.slane %v336, %v549
        %v553 = vmul.f32 %v540, %v546
        %v554 = vmul.f32 %v541, %v550
        %556 = vset.pattern.permute.xlu0 0
        %557 = vperm.xlu0 %556, %v347
        %v558 = vpop.permute.xlu0 %557
        %v560 = vmul.f32 %v558, %v553
        %v561 = vmul.f32 %v558, %v554
        %v562 = vadd.f32 %v533, %v560
        %v563 = vadd.f32 %v534, %v561
        %564 = vrot.lane.b32.xlu0 %v339, 111
        %v565 = vpop.permute.xlu0 %564
        %566 = vrot.lane.b32.xlu0 %v355, 111
        %v567 = vpop.permute.xlu0 %566
        %vm568 = vcmp.lt.s32.totalorder %v364, 111
        %v569 = vsel %vm568, %v565, %v567
        %v570 = vsel %vm568, %v567, %v565
        %v572 = vlaneseq
        %v573 = vshrl.u32 %v572, 7
        %v574 = vsub.s32 0, %v573
        %v575 = vrot.slane %v338, %v574
        %v576 = vlaneseq
        %v577 = vshrl.u32 %v576, 7
        %v578 = vsub.s32 1, %v577
        %v579 = vrot.slane %v338, %v578
        %v582 = vmul.f32 %v569, %v575
        %v583 = vmul.f32 %v570, %v579
        %585 = vset.pattern.permute.xlu0 0
        %586 = vperm.xlu0 %585, %v348
        %v587 = vpop.permute.xlu0 %586
        %v589 = vmul.f32 %v587, %v582
        %v590 = vmul.f32 %v587, %v583
        %v591 = vadd.f32 %v562, %v589
        %v592 = vadd.f32 %v563, %v590
        %v593 = vld [vmem:[%s3] sm:$0xf]
        %595 = vset.pattern.permute.xlu0 0
        %596 = vperm.xlu0 %595, %v593
        %v597 = vpop.permute.xlu0 %596
        %v599 = vadd.f32 %v591, %v597
        %v600 = vadd.f32 %v592, %v597
        %v601 = vmax.f32 %v599, 0.0
        %v602 = vmax.f32 %v600, 0.0
        %v603 = vld [vmem:[%s4] sm:$0xf]
        %v604 = vld [vmem:[%s4 + $0x4] sm:$0xf]
        %v605 = vld [vmem:[%s4 + $0x8] sm:$0xf]
        %v606 = vld [vmem:[%s4 + $0xc] sm:$0xf]
        %608 = vset.pattern.permute.xlu0 0
        %609 = vperm.xlu0 %608, %v603
        %v610 = vpop.permute.xlu0 %609
        %v612 = vlaneseq
        %v613 = vshrl.u32 %v612, 7
        %v614 = vsub.s32 0, %v613
        %v615 = vrot.slane %v601, %v614
        %v616 = vlaneseq
        %v617 = vshrl.u32 %v616, 7
        %v618 = vsub.s32 0, %v617
        %v619 = vrot.slane %v602, %v618
        %v620 = vmul.f32 %v610, %v615
        %v621 = vmul.f32 %v610, %v619
        %623 = vset.pattern.permute.xlu0 0
        %624 = vperm.xlu0 %623, %v604
        %v625 = vpop.permute.xlu0 %624
        %v627 = vlaneseq
        %v628 = vshrl.u32 %v627, 7
        %v629 = vsub.s32 1, %v628
        %v630 = vrot.slane %v601, %v629
        %v631 = vlaneseq
        %v632 = vshrl.u32 %v631, 7
        %v633 = vsub.s32 1, %v632
        %v634 = vrot.slane %v602, %v633
        %v635 = vmul.f32 %v625, %v630
        %v636 = vmul.f32 %v625, %v634
        %v637 = vadd.f32 %v620, %v635
        %v638 = vadd.f32 %v621, %v636
        %640 = vset.pattern.permute.xlu0 0
        %641 = vperm.xlu0 %640, %v605
        %v642 = vpop.permute.xlu0 %641
        %v644 = vlaneseq
        %v645 = vshrl.u32 %v644, 7
        %v646 = vsub.s32 2, %v645
        %v647 = vrot.slane %v601, %v646
        %v648 = vlaneseq
        %v649 = vshrl.u32 %v648, 7
        %v650 = vsub.s32 2, %v649
        %v651 = vrot.slane %v602, %v650
        %v652 = vmul.f32 %v642, %v647
        %v653 = vmul.f32 %v642, %v651
        %v654 = vadd.f32 %v637, %v652
        %v655 = vadd.f32 %v638, %v653
        %657 = vset.pattern.permute.xlu0 0
        %658 = vperm.xlu0 %657, %v606
        %v659 = vpop.permute.xlu0 %658
        %v661 = vlaneseq
        %v662 = vshrl.u32 %v661, 7
        %v663 = vsub.s32 3, %v662
        %v664 = vrot.slane %v601, %v663
        %v665 = vlaneseq
        %v666 = vshrl.u32 %v665, 7
        %v667 = vsub.s32 3, %v666
        %v668 = vrot.slane %v602, %v667
        %v669 = vmul.f32 %v659, %v664
        %v670 = vmul.f32 %v659, %v668
        %v671 = vadd.f32 %v654, %v669
        %v672 = vadd.f32 %v655, %v670
        %v673 = vld [vmem:[%s5] sm:$0xf]
        %v674 = vld [vmem:[%s5 + $0x4] sm:$0xf]
        %v675 = vld [vmem:[%s5 + $0x8] sm:$0xf]
        %v676 = vld [vmem:[%s5 + $0xc] sm:$0xf]
        %v677 = vld [vmem:[%s5 + $0x10] sm:$0xf]
        %v678 = vld [vmem:[%s5 + $0x14] sm:$0xf]
        %v679 = vld [vmem:[%s5 + $0x18] sm:$0xf]
        %v680 = vld [vmem:[%s5 + $0x1c] sm:$0xf]
        %v681 = vld [vmem:[%s5 + $0x20] sm:$0xf]
        %683 = vset.pattern.permute.xlu0 0
        %684 = vperm.xlu0 %683, %v677
        %v685 = vpop.permute.xlu0 %684
        %v687 = vmul.f32 %v685, %v671
        %v688 = vmul.f32 %v685, %v672
        %689 = vrot.lane.b32.xlu0 %v671, 17
        %v690 = vpop.permute.xlu0 %689
        %691 = vrot.lane.b32.xlu0 %v672, 17
        %v692 = vpop.permute.xlu0 %691
        %v693 = vsel %vm365, %v690, %v692
        %v694 = vsel %vm365, %v692, %v690
        %v695 = vmul.f32 %v694, %v372
        %v696 = vmul.f32 %v693, %v376
        %698 = vset.pattern.permute.xlu0 0
        %699 = vperm.xlu0 %698, %v673
        %v700 = vpop.permute.xlu0 %699
        %v702 = vmul.f32 %v700, %v695
        %v703 = vmul.f32 %v700, %v696
        %v704 = vadd.f32 %v687, %v702
        %v705 = vadd.f32 %v688, %v703
        %706 = vrot.lane.b32.xlu0 %v671, 16
        %v707 = vpop.permute.xlu0 %706
        %708 = vrot.lane.b32.xlu0 %v672, 16
        %v709 = vpop.permute.xlu0 %708
        %v710 = vsel %vm394, %v707, %v709
        %v711 = vsel %vm394, %v709, %v707
        %v712 = vmul.f32 %v711, %v401
        %v713 = vmul.f32 %v710, %v405
        %715 = vset.pattern.permute.xlu0 0
        %716 = vperm.xlu0 %715, %v674
        %v717 = vpop.permute.xlu0 %716
        %v719 = vmul.f32 %v717, %v712
        %v720 = vmul.f32 %v717, %v713
        %v721 = vadd.f32 %v704, %v719
        %v722 = vadd.f32 %v705, %v720
        %723 = vrot.lane.b32.xlu0 %v671, 15
        %v724 = vpop.permute.xlu0 %723
        %725 = vrot.lane.b32.xlu0 %v672, 15
        %v726 = vpop.permute.xlu0 %725
        %v727 = vsel %vm423, %v724, %v726
        %v728 = vsel %vm423, %v726, %v724
        %v729 = vmul.f32 %v728, %v430
        %v730 = vmul.f32 %v727, %v434
        %732 = vset.pattern.permute.xlu0 0
        %733 = vperm.xlu0 %732, %v675
        %v734 = vpop.permute.xlu0 %733
        %v736 = vmul.f32 %v734, %v729
        %v737 = vmul.f32 %v734, %v730
        %v738 = vadd.f32 %v721, %v736
        %v739 = vadd.f32 %v722, %v737
        %740 = vrot.lane.b32.xlu0 %v671, 1
        %v741 = vpop.permute.xlu0 %740
        %742 = vrot.lane.b32.xlu0 %v672, 1
        %v743 = vpop.permute.xlu0 %742
        %v744 = vsel %vm452, %v741, %v743
        %v745 = vsel %vm452, %v743, %v741
        %v746 = vmul.f32 %v745, %v459
        %v747 = vmul.f32 %v744, %v463
        %749 = vset.pattern.permute.xlu0 0
        %750 = vperm.xlu0 %749, %v676
        %v751 = vpop.permute.xlu0 %750
        %v753 = vmul.f32 %v751, %v746
        %v754 = vmul.f32 %v751, %v747
        %v755 = vadd.f32 %v738, %v753
        %v756 = vadd.f32 %v739, %v754
        %757 = vrot.lane.b32.xlu0 %v671, 127
        %v758 = vpop.permute.xlu0 %757
        %759 = vrot.lane.b32.xlu0 %v672, 127
        %v760 = vpop.permute.xlu0 %759
        %v761 = vsel %vm481, %v758, %v760
        %v762 = vsel %vm481, %v760, %v758
        %v763 = vmul.f32 %v761, %v488
        %v764 = vmul.f32 %v762, %v492
        %766 = vset.pattern.permute.xlu0 0
        %767 = vperm.xlu0 %766, %v678
        %v768 = vpop.permute.xlu0 %767
        %v770 = vmul.f32 %v768, %v763
        %v771 = vmul.f32 %v768, %v764
        %v772 = vadd.f32 %v755, %v770
        %v773 = vadd.f32 %v756, %v771
        %774 = vrot.lane.b32.xlu0 %v671, 113
        %v775 = vpop.permute.xlu0 %774
        %776 = vrot.lane.b32.xlu0 %v672, 113
        %v777 = vpop.permute.xlu0 %776
        %v778 = vsel %vm510, %v775, %v777
        %v779 = vsel %vm510, %v777, %v775
        %v780 = vmul.f32 %v778, %v517
        %v781 = vmul.f32 %v779, %v521
        %783 = vset.pattern.permute.xlu0 0
        %784 = vperm.xlu0 %783, %v679
        %v785 = vpop.permute.xlu0 %784
        %v787 = vmul.f32 %v785, %v780
        %v788 = vmul.f32 %v785, %v781
        %v789 = vadd.f32 %v772, %v787
        %v790 = vadd.f32 %v773, %v788
        %791 = vrot.lane.b32.xlu0 %v671, 112
        %v792 = vpop.permute.xlu0 %791
        %793 = vrot.lane.b32.xlu0 %v672, 112
        %v794 = vpop.permute.xlu0 %793
        %v795 = vsel %vm539, %v792, %v794
        %v796 = vsel %vm539, %v794, %v792
        %v797 = vmul.f32 %v795, %v546
        %v798 = vmul.f32 %v796, %v550
        %800 = vset.pattern.permute.xlu0 0
        %801 = vperm.xlu0 %800, %v680
        %v802 = vpop.permute.xlu0 %801
        %v804 = vmul.f32 %v802, %v797
        %v805 = vmul.f32 %v802, %v798
        %v806 = vadd.f32 %v789, %v804
        %v807 = vadd.f32 %v790, %v805
        %808 = vrot.lane.b32.xlu0 %v671, 111
        %v809 = vpop.permute.xlu0 %808
        %810 = vrot.lane.b32.xlu0 %v672, 111
        %v811 = vpop.permute.xlu0 %810
        %v812 = vsel %vm568, %v809, %v811
        %v813 = vsel %vm568, %v811, %v809
        %v814 = vmul.f32 %v812, %v575
        %v815 = vmul.f32 %v813, %v579
        %817 = vset.pattern.permute.xlu0 0
        %818 = vperm.xlu0 %817, %v681
        %v819 = vpop.permute.xlu0 %818
        %v821 = vmul.f32 %v819, %v814
        %v822 = vmul.f32 %v819, %v815
        %v823 = vadd.f32 %v806, %v821
        %v824 = vadd.f32 %v807, %v822
        %v825 = vld [vmem:[%s6] sm:$0xf]
        %827 = vset.pattern.permute.xlu0 0
        %828 = vperm.xlu0 %827, %v825
        %v829 = vpop.permute.xlu0 %828
        %v831 = vadd.f32 %v823, %v829
        %v832 = vadd.f32 %v824, %v829
        %v833 = vmax.f32 %v831, 0.0
        %v834 = vmax.f32 %v832, 0.0
        %v835 = vld [vmem:[%s7] sm:$0xf]
        %v836 = vld [vmem:[%s7 + $0x4] sm:$0xf]
        %v837 = vld [vmem:[%s7 + $0x8] sm:$0xf]
        %v838 = vld [vmem:[%s7 + $0xc] sm:$0xf]
        %840 = vset.pattern.permute.xlu0 0
        %841 = vperm.xlu0 %840, %v835
        %v842 = vpop.permute.xlu0 %841
        %v844 = vlaneseq
        %v845 = vshrl.u32 %v844, 7
        %v846 = vsub.s32 0, %v845
        %v847 = vrot.slane %v833, %v846
        %v848 = vlaneseq
        %v849 = vshrl.u32 %v848, 7
        %v850 = vsub.s32 0, %v849
        %v851 = vrot.slane %v834, %v850
        %v852 = vmul.f32 %v842, %v847
        %v853 = vmul.f32 %v842, %v851
        %855 = vset.pattern.permute.xlu0 0
        %856 = vperm.xlu0 %855, %v836
        %v857 = vpop.permute.xlu0 %856
        %v859 = vlaneseq
        %v860 = vshrl.u32 %v859, 7
        %v861 = vsub.s32 1, %v860
        %v862 = vrot.slane %v833, %v861
        %v863 = vlaneseq
        %v864 = vshrl.u32 %v863, 7
        %v865 = vsub.s32 1, %v864
        %v866 = vrot.slane %v834, %v865
        %v867 = vmul.f32 %v857, %v862
        %v868 = vmul.f32 %v857, %v866
        %v869 = vadd.f32 %v852, %v867
        %v870 = vadd.f32 %v853, %v868
        %872 = vset.pattern.permute.xlu0 0
        %873 = vperm.xlu0 %872, %v837
        %v874 = vpop.permute.xlu0 %873
        %v876 = vlaneseq
        %v877 = vshrl.u32 %v876, 7
        %v878 = vsub.s32 2, %v877
        %v879 = vrot.slane %v833, %v878
        %v880 = vlaneseq
        %v881 = vshrl.u32 %v880, 7
        %v882 = vsub.s32 2, %v881
        %v883 = vrot.slane %v834, %v882
        %v884 = vmul.f32 %v874, %v879
        %v885 = vmul.f32 %v874, %v883
        %v886 = vadd.f32 %v869, %v884
        %v887 = vadd.f32 %v870, %v885
        %889 = vset.pattern.permute.xlu0 0
        %890 = vperm.xlu0 %889, %v838
        %v891 = vpop.permute.xlu0 %890
        %v893 = vlaneseq
        %v894 = vshrl.u32 %v893, 7
        %v895 = vsub.s32 3, %v894
        %v896 = vrot.slane %v833, %v895
        %v897 = vlaneseq
        %v898 = vshrl.u32 %v897, 7
        %v899 = vsub.s32 3, %v898
        %v900 = vrot.slane %v834, %v899
        %v901 = vmul.f32 %v891, %v896
        %v902 = vmul.f32 %v891, %v900
        %v903 = vadd.f32 %v886, %v901
        %v904 = vadd.f32 %v887, %v902
        %v907 = vcombine.low %v903, %v904
        %909 = vst [vmem:[%s321] sm:$0xff] %v907
        %s910 = sand.u32 %s206, 1
        %s911 = scalar_lea.sflag [#allocation4], %s910
        %s912 = sand.u32 %s206, 1
        %s913 = smul.addr %s912, 8
        %s914 = scalar_lea.vmem [#allocation5], %s913
        // Predicated region
        $region57: #{tpu_custom_call.1} parent=51 // pred_check
          %p915 = pneg %p216
        $region58: #{tpu_custom_call.1} parent=51 // pred_check_branch
          %917 = sbr.rel (%p915) target = $region60
        $region59: #{tpu_custom_call.1} parent=51 // pred_region
          %s918 = smul.u32 2, %s25
          %s920 = ssub.s32 128, 128
          %921 = vsyncadd %s911, %s920
          %s922 = smul.addr %s918, 64
          %s923 = scalar_lea.hbm %s8, %s922
          %s925 = sshll.u32 %s914, 4
          %s926 = int_to_ptr.vmem [resolvable:$true] %s925
          %928 = dma.vmem_to_hbm [thread:$0]  %s926, 128, %s923, %s911
        $region60: #{tpu_custom_call.1} parent=51 // pred_fallthru
          _
      $region52: #{tpu_custom_call.1} parent=5 // pred_fallthru
        _
      %p929 = scmp.le.s32.totalorder 2, %s20
      // Predicated region
      $region61: #{tpu_custom_call.1} parent=5 // pred_check
        %p930 = pneg %p929
      $region62: #{tpu_custom_call.1} parent=5 // pred_check_branch
        %932 = sbr.rel (%p930) target = $region64
      $region63: #{tpu_custom_call.1} parent=5 // pred_region
        %s933 = ssub.s32 %s20, 2
        // Predicated region
        $region65: #{tpu_custom_call.1} parent=63 // pred_check
          %p934 = pneg %p222
        $region66: #{tpu_custom_call.1} parent=63 // pred_check_branch
          %936 = sbr.rel (%p934) target = $region68
        $region67: #{tpu_custom_call.1} parent=63 // pred_region
          %s937 = sand.u32 %s207, 1
          %s938 = scalar_lea.sflag [#allocation4], %s937
          %s939 = sand.u32 %s207, 1
          %s940 = smul.addr %s939, 8
          %s941 = scalar_lea.vmem [#allocation5], %s940
          %942 = dma.done %s938, 128
        $region68: #{tpu_custom_call.1} parent=63 // pred_fallthru
          _
      $region64: #{tpu_custom_call.1} parent=5 // pred_fallthru
        _
    $region6: #{tpu_custom_call.1} parent=1 // loop_footer
      %s24 = sadd.s32 1, %s20
    $region7: #{tpu_custom_call.1} parent=1 // loop_footer_branch
      %19 = sbr.rel target = $region3
    $region8: #{tpu_custom_call.1} parent=1 // loop_exit
      _
    %943 = vsyncpa [#allocation3], 1
    %s944 = scalar_lea.sflag [#allocation3], 1
    %945 = vsyncpa %s944, 1
    %946 = vsyncpa [#allocation4], 1
    %s947 = scalar_lea.sflag [#allocation4], 1
    %948 = vsyncpa %s947, 1

</llo_original>
